<compile_context>
chip_gen: v5e
topology: v5e:2x2
jax: 0.10.0
libtpu: 0.0.40
codegen_flags: <defaults>
</compile_context>

<pallas_src>
import jax
import jax.numpy as jnp
from jax.experimental import pallas as pl
from jax.experimental.pallas import tpu as pltpu


def mlp_kernel(x_ref, w1_ref, b1_ref, w23_ref, b23_ref, o_ref):
    x = x_ref[...]
    # fc1 + relu
    h = jnp.dot(x, w1_ref[...], preferred_element_type=jnp.float32) + b1_ref[...]
    h = jnp.maximum(h, 0.0)
    # fused fc2+fc3 (no activation between them in the PyTorch forward)
    logits = jnp.dot(h, w23_ref[...], preferred_element_type=jnp.float32) + b23_ref[...]
    # softmax over dim=1 (feature axis), numerically stable
    m = jnp.max(logits, axis=-1, keepdims=True)
    e = jnp.exp(logits - m)
    denom = jnp.sum(e, axis=-1, keepdims=True)
    o_ref[...] = (e * pl.reciprocal(denom, approx=False)).astype(o_ref.dtype)


def fuse_params(params):
    """One-time host-side fusion of fc2/fc3 (exact in math, f32-equivalent in practice)."""
    w1, b1, w2, b2, w3, b3 = params
    w23 = w2 @ w3            # (10, 3)
    b23 = b2 @ w3 + b3       # (1, 3)
    return w1, b1, w23, b23


def _round_up(n, m):
    return ((n + m - 1) // m) * m


def net_forward(x, fused_params, *, tb=4096):
    """x: (B, 4) f32. fused_params: (w1 (4,10), b1 (1,10), w23 (10,3), b23 (1,3))."""
    w1, b1, w23, b23 = fused_params
    B, f_in = x.shape
    assert f_in == 4

    # Clamp the batch tile for small B (tile rows must be a multiple of 8),
    # then zero-pad the batch so it divides evenly into TB-row blocks.
    tb = max(8, min(tb, _round_up(B, 8)))
    b_pad = _round_up(B, tb)
    if b_pad != B:
        x = jnp.pad(x, ((0, b_pad - B), (0, 0)))
    grid = (b_pad // tb,)

    const = lambda shape: pl.BlockSpec(shape, lambda i: (0, 0))  # VMEM-resident weights

    out = pl.pallas_call(
        mlp_kernel,
        out_shape=jax.ShapeDtypeStruct((b_pad, 3), jnp.float32),
        grid=grid,
        in_specs=[
            pl.BlockSpec((tb, 4), lambda i: (i, 0)),   # x: tiled over batch
            const((4, 10)),                            # w1
            const((1, 10)),                            # b1
            const((10, 3)),                            # w23 (fused fc2@fc3)
            const((1, 3)),                             # b23
        ],
        out_specs=pl.BlockSpec((tb, 3), lambda i: (i, 0)),
        compiler_params=pltpu.CompilerParams(
            dimension_semantics=("parallel",),         # lets v7x shard batch tiles over 2 TCs
        ),
    )(x, w1, b1, w23, b23)
    return out[:B]


def init_params(key):
    """Deterministic init mimicking PyTorch Linear's U(-1/sqrt(fan_in), 1/sqrt(fan_in))."""
    def linear(key, fan_in, fan_out):
        k_w, k_b = jax.random.split(key)
        bound = 1.0 / jnp.sqrt(fan_in)
        # stored as (in, out) so the kernel does x @ W
        w = jax.random.uniform(k_w, (fan_in, fan_out), jnp.float32, -bound, bound)
        b = jax.random.uniform(k_b, (1, fan_out), jnp.float32, -bound, bound)
        return w, b

    k1, k2, k3 = jax.random.split(key, 3)
    w1, b1 = linear(k1, 4, 10)
    w2, b2 = linear(k2, 10, 10)
    w3, b3 = linear(k3, 10, 3)
    return (w1, b1, w2, b2, w3, b3)


if __name__ == "__main__":
    key = jax.random.PRNGKey(0)
    k_params, k_x = jax.random.split(key)
    params = init_params(k_params)
    fused = fuse_params(params)                       # host-side, once
    x = jax.random.normal(k_x, (8, 4), dtype=jnp.float32)  # batch=8, features=4

    out = net_forward(x, fused)
    out = jax.block_until_ready(out)

    # sanity: reference in plain JAX using the ORIGINAL (unfused) 3-layer params
    w1, b1, w2, b2, w3, b3 = params
    h = jnp.maximum(x @ w1 + b1, 0.0)
    h = h @ w2 + b2
    h = h @ w3 + b3
    ref = jax.nn.softmax(h, axis=1)
    assert out.shape == (8, 3)
    assert jnp.allclose(out, ref, atol=1e-5, rtol=1e-5)
    assert jnp.allclose(jnp.sum(out, axis=1), 1.0, atol=1e-5)

    print("KERNEL_OK")
</pallas_src>

<mosaic_0001>
module attributes {stable_mosaic.version = 11 : i64} {
  func.func @mlp_kernel(%arg0: i32, %arg1: memref<8x4xf32, #tpu.memory_space<vmem>>, %arg2: memref<4x10xf32, #tpu.memory_space<vmem>>, %arg3: memref<1x10xf32, #tpu.memory_space<vmem>>, %arg4: memref<10x3xf32, #tpu.memory_space<vmem>>, %arg5: memref<1x3xf32, #tpu.memory_space<vmem>>, %arg6: memref<8x3xf32, #tpu.memory_space<vmem>>) attributes {dimension_semantics = [#tpu.dimension_semantics<parallel>], iteration_bounds = array<i64: 1>, scalar_prefetch = 0 : i64, scratch_operands = 0 : i64, tpu.core_type = #tpu.core_type<tc>, window_params = [{transform_indices = @transform_0, window_bounds = array<i64: 8, 4>}, {pipeline_mode = #tpu.pipeline_mode<synchronous>, transform_indices = @transform_1, window_bounds = array<i64: 4, 10>}, {pipeline_mode = #tpu.pipeline_mode<synchronous>, transform_indices = @transform_2, window_bounds = array<i64: 1, 10>}, {pipeline_mode = #tpu.pipeline_mode<synchronous>, transform_indices = @transform_3, window_bounds = array<i64: 10, 3>}, {pipeline_mode = #tpu.pipeline_mode<synchronous>, transform_indices = @transform_4, window_bounds = array<i64: 1, 3>}, {transform_indices = @transform_5, window_bounds = array<i64: 8, 3>}]} {
    %c0 = arith.constant 0 : index
    %c0_0 = arith.constant 0 : index
    %0 = vector.load %arg1[%c0, %c0_0] : memref<8x4xf32, #tpu.memory_space<vmem>>, vector<8x4xf32>
    %c0_1 = arith.constant 0 : index
    %c0_2 = arith.constant 0 : index
    %1 = vector.load %arg2[%c0_1, %c0_2] : memref<4x10xf32, #tpu.memory_space<vmem>>, vector<4x10xf32>
    %cst = arith.constant dense<0.000000e+00> : vector<8x10xf32>
    %2 = tpu.matmul %0, %1, %cst {dimension_numbers = #tpu.dot_dimension_numbers<[1], [0], [0], [1], [0, 0, 1, 1], [], []>} : vector<8x4xf32>, vector<4x10xf32>, vector<8x10xf32> -> vector<8x10xf32>
    %c0_3 = arith.constant 0 : index
    %c0_4 = arith.constant 0 : index
    %3 = vector.load %arg3[%c0_3, %c0_4] : memref<1x10xf32, #tpu.memory_space<vmem>>, vector<1x10xf32>
    %4 = vector.broadcast %3 : vector<1x10xf32> to vector<8x10xf32>
    %5 = arith.addf %2, %4 : vector<8x10xf32>
    %cst_5 = arith.constant 0.000000e+00 : f32
    %6 = vector.broadcast %cst_5 : f32 to vector<8x10xf32>
    %7 = arith.maximumf %5, %6 : vector<8x10xf32>
    %c0_6 = arith.constant 0 : index
    %c0_7 = arith.constant 0 : index
    %8 = vector.load %arg4[%c0_6, %c0_7] : memref<10x3xf32, #tpu.memory_space<vmem>>, vector<10x3xf32>
    %cst_8 = arith.constant dense<0.000000e+00> : vector<8x3xf32>
    %9 = tpu.matmul %7, %8, %cst_8 {dimension_numbers = #tpu.dot_dimension_numbers<[1], [0], [0], [1], [0, 0, 1, 1], [], []>} : vector<8x10xf32>, vector<10x3xf32>, vector<8x3xf32> -> vector<8x3xf32>
    %c0_9 = arith.constant 0 : index
    %c0_10 = arith.constant 0 : index
    %10 = vector.load %arg5[%c0_9, %c0_10] : memref<1x3xf32, #tpu.memory_space<vmem>>, vector<1x3xf32>
    %11 = vector.broadcast %10 : vector<1x3xf32> to vector<8x3xf32>
    %12 = arith.addf %9, %11 : vector<8x3xf32>
    %cst_11 = arith.constant dense<0xFF800000> : vector<8xf32>
    %13 = vector.multi_reduction <maximumf>, %12, %cst_11 [1] : vector<8x3xf32> to vector<8xf32>
    %14 = vector.shape_cast %13 : vector<8xf32> to vector<8x1xf32>
    %15 = vector.broadcast %14 : vector<8x1xf32> to vector<8x3xf32>
    %16 = arith.subf %12, %15 : vector<8x3xf32>
    %17 = math.exp %16 : vector<8x3xf32>
    %cst_12 = arith.constant dense<0.000000e+00> : vector<8xf32>
    %18 = vector.multi_reduction <add>, %17, %cst_12 [1] : vector<8x3xf32> to vector<8xf32>
    %19 = vector.shape_cast %18 : vector<8xf32> to vector<8x1xf32>
    %20 = tpu.reciprocal %19 : vector<8x1xf32> -> vector<8x1xf32>
    %21 = vector.broadcast %20 : vector<8x1xf32> to vector<8x3xf32>
    %22 = arith.mulf %17, %21 : vector<8x3xf32>
    %c0_13 = arith.constant 0 : index
    %c0_14 = arith.constant 0 : index
    %23 = vector.load %arg6[%c0_13, %c0_14] : memref<8x3xf32, #tpu.memory_space<vmem>>, vector<8x3xf32>
    tpu.vector_store %arg6[%c0_13, %c0_14], %22 {strides = array<i32>} : memref<8x3xf32, #tpu.memory_space<vmem>>, vector<8x3xf32>,
    return
  }
  func.func @transform_0(%arg0: i32) -> (i32, i32) {
    %c0_i32 = arith.constant 0 : i32
    %c0_i32_0 = arith.constant 0 : i32
    return %arg0, %c0_i32 : i32, i32
  }
  func.func @transform_1(%arg0: i32) -> (i32, i32) {
    %c0_i32 = arith.constant 0 : i32
    %c0_i32_0 = arith.constant 0 : i32
    %c0_i32_1 = arith.constant 0 : i32
    return %c0_i32, %c0_i32_0 : i32, i32
  }
  func.func @transform_2(%arg0: i32) -> (i32, i32) {
    %c0_i32 = arith.constant 0 : i32
    %c0_i32_0 = arith.constant 0 : i32
    %c0_i32_1 = arith.constant 0 : i32
    return %c0_i32, %c0_i32_0 : i32, i32
  }
  func.func @transform_3(%arg0: i32) -> (i32, i32) {
    %c0_i32 = arith.constant 0 : i32
    %c0_i32_0 = arith.constant 0 : i32
    %c0_i32_1 = arith.constant 0 : i32
    return %c0_i32, %c0_i32_0 : i32, i32
  }
  func.func @transform_4(%arg0: i32) -> (i32, i32) {
    %c0_i32 = arith.constant 0 : i32
    %c0_i32_0 = arith.constant 0 : i32
    %c0_i32_1 = arith.constant 0 : i32
    return %c0_i32, %c0_i32_0 : i32, i32
  }
  func.func @transform_5(%arg0: i32) -> (i32, i32) {
    %c0_i32 = arith.constant 0 : i32
    %c0_i32_0 = arith.constant 0 : i32
    return %arg0, %c0_i32 : i32, i32
  }
}

</mosaic_0001>

<llo_original>
// kernel: tpu_custom_call.1
$region0: #{tpu_custom_call.1}
  #allocation0 [shape = 'u32[]', space=smem, size = 0x4, offset = 0x4, fixed_abs, tag = 'smem constant byte address 0x4 - core index']
  #allocation1 [shape = 'u32[72,128]{1,0:T(1,128)}', space=vmem, size = 0x9000, scoped, tag = 'internal scratch']
  %s0 = inlined_call_operand.vmem [shape: f32[8,4], index: 0, kind: input, shape index: {}]
  %s1 = inlined_call_operand.vmem [shape: f32[4,10], index: 1, kind: input, shape index: {}]
  %s2 = inlined_call_operand.vmem [shape: f32[1,10], index: 2, kind: input, shape index: {}]
  %s3 = inlined_call_operand.vmem [shape: f32[10,3], index: 3, kind: input, shape index: {}]
  %s4 = inlined_call_operand.vmem [shape: f32[1,3], index: 4, kind: input, shape index: {}]
  %s5 = inlined_call_operand.vmem [shape: f32[8,3], index: 5, kind: output, shape index: {}]
  %s6 = sld [smem:[#allocation0]]
  $region30: #{tpu_custom_call.1} parent=0
    _
  %s8 = ssub.s32 1, %s6
  %s9 = scalar_select 0, %s8, %s6
  // Predicated region
  $region2: #{tpu_custom_call.1} parent=0 // pred_check
    _
  $region3: #{tpu_custom_call.1} parent=0 // pred_check_branch
    %11 = sbr.rel (0) target = $region5
  $region4: #{tpu_custom_call.1} parent=0 // pred_region
    _
  $region5: #{tpu_custom_call.1} parent=0 // pred_fallthru
    _
  // Predicated region
  $region6: #{tpu_custom_call.1} parent=0 // pred_check
    _
  $region7: #{tpu_custom_call.1} parent=0 // pred_check_branch
    %13 = sbr.rel (0) target = $region9
  $region8: #{tpu_custom_call.1} parent=0 // pred_region
    _
  $region9: #{tpu_custom_call.1} parent=0 // pred_fallthru
    _
  // Predicated region
  $region10: #{tpu_custom_call.1} parent=0 // pred_check
    _
  $region11: #{tpu_custom_call.1} parent=0 // pred_check_branch
    %15 = sbr.rel (0) target = $region13
  $region12: #{tpu_custom_call.1} parent=0 // pred_region
    _
  $region13: #{tpu_custom_call.1} parent=0 // pred_fallthru
    _
  // Predicated region
  $region14: #{tpu_custom_call.1} parent=0 // pred_check
    _
  $region15: #{tpu_custom_call.1} parent=0 // pred_check_branch
    %17 = sbr.rel (0) target = $region17
  $region16: #{tpu_custom_call.1} parent=0 // pred_region
    _
  $region17: #{tpu_custom_call.1} parent=0 // pred_fallthru
    _
  // Predicated region
  $region18: #{tpu_custom_call.1} parent=0 // pred_check
    _
  $region19: #{tpu_custom_call.1} parent=0 // pred_check_branch
    %19 = sbr.rel (0) target = $region21
  $region20: #{tpu_custom_call.1} parent=0 // pred_region
    _
  $region21: #{tpu_custom_call.1} parent=0 // pred_fallthru
    _
  %v20 = vld [vmem:[%s0] sm:$0xff]
  %v21 = vld [vmem:[%s1] sm:$0xf]
  %v22 = vld [vmem:[%s2] sm:$0x1]
  %v24 = vperm.slane %v22, 0
  %vm26 = vcmask 31744
  %v28 = vsel %vm26, %v20, 0
  %vm30 = vcmask 1043456
  %v32 = vsel %vm30, %v21, 0
  %34 = vmatpush.msra.mxu0 0.0
  %35 = vmatpush.msra.mxu0 0.0
  %36 = vmatpush.msra.mxu0 0.0
  %37 = vmatpush.msra.mxu0 0.0
  %38 = vmatpush.msra.mxu0 0.0
  %39 = vmatpush.msra.mxu0 0.0
  %40 = vmatpush.msra.mxu0 0.0
  %41 = vmatpush.msra.mxu0 0.0
  %42 = vmatpush.msra.mxu0 0.0
  %43 = vmatpush.msra.mxu0 0.0
  %44 = vmatpush.msra.mxu0 0.0
  %45 = vmatpush.msra.mxu0 0.0
  %46 = vmatpush.msra.mxu0 0.0
  %47 = vmatpush.msra.mxu0 0.0
  %48 = vmatpush.msra.mxu0 0.0
  %49 = vmatpush.msra.mxu0 %v32
  %50 = vmatmul.f32.gmra.mxu0 %v28
  %v51 = vpop.f32.mrf.mxu0
  %v52 = vadd.f32 %v24, %v51
  %53 = vdwg.mxu0
  %v54 = vmax.f32 %v52, 0.0
  %v55 = vld [vmem:[%s3] sm:$0xff]
  %v56 = vld [vmem:[%s3 + $0x8] sm:$0x3]
  %v57 = vld [vmem:[%s4] sm:$0x1]
  %v59 = vperm.slane %v57, 0
  %vm61 = vcmask 80896
  %v63 = vsel %vm61, %v54, 0
  %vm65 = vcmask 1041408
  %v67 = vsel %vm65, %v56, 0
  %69 = vmatpush.msra.mxu0 0.0
  %70 = vmatpush.msra.mxu0 0.0
  %71 = vmatpush.msra.mxu0 0.0
  %72 = vmatpush.msra.mxu0 0.0
  %73 = vmatpush.msra.mxu0 0.0
  %74 = vmatpush.msra.mxu0 0.0
  %75 = vmatpush.msra.mxu0 0.0
  %76 = vmatpush.msra.mxu0 0.0
  %77 = vmatpush.msra.mxu0 0.0
  %78 = vmatpush.msra.mxu0 0.0
  %79 = vmatpush.msra.mxu0 0.0
  %80 = vmatpush.msra.mxu0 0.0
  %81 = vmatpush.msra.mxu0 0.0
  %82 = vmatpush.msra.mxu0 0.0
  %83 = vmatpush.msra.mxu0 %v67
  %84 = vmatpush.msra.mxu0 %v55
  %85 = vmatmul.f32.gmra.mxu0 %v63
  %v86 = vpop.f32.mrf.mxu0
  %v87 = vadd.f32 %v59, %v86
  %88 = vdwg.mxu0
  %vm89 = vcmask 23552
  %v90 = vsel %vm89, %v87, -inf
  %91 = vmax.xlane.f32.xlu0 %v90
  %v92 = vpop.xlane.xlu0 %91
  %v93 = vsub.f32 %v87, %v92
  %v94 = vmul.f32 %v93, 1.442695
  %v95 = vpow.pop %v94
  %v96 = vsel %vm89, %v95, 0.0
  %97 = vadd.xlane.f32.xlu0 %v96
  %v98 = vpop.xlane.xlu0 %97
  %v99 = vrcp.pop %v98
  %v100 = vmul.f32 %v98, %v99
  %v101 = vsub.f32 1.0, %v100
  %v102 = vmul.f32 %v99, %v101
  %v103 = vadd.f32 %v99, %v102
  %vm104 = vweird.f32 %v98
  %vm105 = vweird.f32 %v99
  %vm106 = vmor %vm104, %vm105
  %v107 = vsel %vm106, %v99, %v103
  %v108 = vand.u32 2147483647, %v98
  %vm109 = vcmp.eq.f32.partialorder %v108, 8.507059e+37
  %v110 = vand.u32 %v98, 2147483648
  %v111 = vor.u32 1.1754944e-38, %v110
  %v112 = vsel %vm109, %v111, %v107
  %v113 = vmul.f32 %v95, %v112
  %114 = vst.msk [vmem:[%s5] sm:$0xff] %vm89, %v113
  // Predicated region
  $region22: #{tpu_custom_call.1} parent=0 // pred_check
    _
  $region23: #{tpu_custom_call.1} parent=0 // pred_check_branch
    %116 = sbr.rel (0) target = $region25
  $region24: #{tpu_custom_call.1} parent=0 // pred_region
    _
  $region25: #{tpu_custom_call.1} parent=0 // pred_fallthru
    _
  // Predicated region
  $region26: #{tpu_custom_call.1} parent=0 // pred_check
    _
  $region27: #{tpu_custom_call.1} parent=0 // pred_check_branch
    %118 = sbr.rel (0) target = $region29
  $region28: #{tpu_custom_call.1} parent=0 // pred_region
    _
  $region29: #{tpu_custom_call.1} parent=0 // pred_fallthru
    _

</llo_original>
